<compile_context>
chip_gen: v5e
topology: v5e:2x2
jax: 0.10.0
libtpu: 0.0.40
codegen_flags: <defaults>
</compile_context>

<pallas_src>
import jax
import jax.numpy as jnp
from jax.experimental import pallas as pl
from jax.experimental.pallas import tpu as pltpu

P_DROP = 0.1
# keep element iff bits >= threshold  ->  P(keep) = 1 - P_DROP (to within 2**-32)
_DROP_THRESHOLD = int(round(P_DROP * (1 << 32)))  # 429496730
_KEEP_SCALE = 1.0 / (1.0 - P_DROP)


def _model_kernel(lhs_ref, rhs_ref, bits_ref, o_ref, acc_ref):
    """grid = (batch, i, j, k); k is the contraction axis (last, 'arbitrary')."""
    k = pl.program_id(3)

    @pl.when(k == 0)
    def _():
        acc_ref[...] = jnp.zeros_like(acc_ref)

    # MXU matmul tile, f32 accumulation. HIGHEST precision keeps f32 torch semantics
    # (the optional bf16 fast path was not taken to preserve accuracy).
    acc_ref[...] += jnp.dot(
        lhs_ref[0],
        rhs_ref[0],
        preferred_element_type=jnp.float32,
        precision=jax.lax.Precision.HIGHEST,
    )

    # Dropout + elementwise product fused into the final-k epilogue only.
    @pl.when(k == pl.num_programs(3) - 1)
    def _():
        x2 = acc_ref[...]
        keep = bits_ref[0] >= jnp.uint32(_DROP_THRESHOLD)
        # x5 = dropout(x2) * x2 = where(keep, x2^2 / (1 - p), 0)
        o_ref[0] = jnp.where(keep, (x2 * x2) * _KEEP_SCALE, 0.0).astype(o_ref.dtype)


def _pick_tile(S: int) -> int:
    for t in (512, 256, 128):
        if S % t == 0:
            return t
    return S  # fall back to full extent (always legal for BlockSpec)


def _model_pallas(x1: jax.Array, bits: jax.Array) -> jax.Array:
    B, S, S2 = x1.shape
    assert S == S2, "torch.matmul(x1, x1) requires square trailing dims"
    t = _pick_tile(S)
    grid = (B, S // t, S // t, S // t)

    return pl.pallas_call(
        _model_kernel,
        out_shape=jax.ShapeDtypeStruct((B, S, S), x1.dtype),
        grid=grid,
        in_specs=[
            pl.BlockSpec((1, t, t), lambda b, i, j, k: (b, i, k)),  # LHS tile of x1
            pl.BlockSpec((1, t, t), lambda b, i, j, k: (b, k, j)),  # RHS tile of x1
            pl.BlockSpec((1, t, t), lambda b, i, j, k: (b, i, j)),  # dropout bits
        ],
        out_specs=pl.BlockSpec((1, t, t), lambda b, i, j, k: (b, i, j)),
        scratch_shapes=[pltpu.VMEM((t, t), jnp.float32)],
        compiler_params=pltpu.CompilerParams(
            dimension_semantics=("parallel", "parallel", "parallel", "arbitrary"),
        ),
        cost_estimate=pl.CostEstimate(
            flops=2 * B * S * S * S,
            transcendentals=0,
            bytes_accessed=4 * B * S * S * 3,
        ),
    )(x1, x1, bits)


def model_forward(x1: jax.Array, dropout_key: jax.Array) -> jax.Array:
    """x1: (B, S, S) float32. Returns x5 = dropout(x1 @ x1, p=0.1) * (x1 @ x1)."""
    B, S, _ = x1.shape
    bits = jax.random.bits(dropout_key, (B, S, S), dtype=jnp.uint32)
    return _model_pallas(x1, bits)


if __name__ == "__main__":
    root = jax.random.PRNGKey(0)
    x_key, drop_key = jax.random.split(root)

    # Small, self-consistent shapes: trailing dims must be equal for x1 @ x1.
    B, S = 2, 128
    x1 = jax.random.normal(x_key, (B, S, S), dtype=jnp.float32)

    out = jax.block_until_ready(model_forward(x1, drop_key))

    # Reference: reconstruct the exact same dropout mask outside the kernel.
    bits = jax.random.bits(drop_key, (B, S, S), dtype=jnp.uint32)
    keep = bits >= jnp.uint32(_DROP_THRESHOLD)
    x2 = jnp.einsum(
        "bij,bjk->bik", x1, x1, precision=jax.lax.Precision.HIGHEST
    )
    ref = jnp.where(keep, (x2 * x2) * _KEEP_SCALE, 0.0)

    # Dropped positions are exactly zero; kept positions match the reference.
    assert bool(jnp.all(jnp.where(keep, True, out == 0.0)))
    kept_err = jnp.where(keep, jnp.abs(out - ref) / (jnp.abs(ref) + 1e-3), 0.0)
    assert float(jnp.max(kept_err)) < 1e-2, float(jnp.max(kept_err))
    drop_frac = float(jnp.mean((~keep).astype(jnp.float32)))
    assert 0.05 < drop_frac < 0.15, drop_frac

    print("KERNEL_OK")
</pallas_src>

<mosaic_0001>
module attributes {stable_mosaic.version = 11 : i64} {
  func.func @_model_kernel(%arg0: i32, %arg1: i32, %arg2: i32, %arg3: i32, %arg4: memref<1x128x128xf32, #tpu.memory_space<vmem>>, %arg5: memref<1x128x128xf32, #tpu.memory_space<vmem>>, %arg6: memref<1x128x128xi32, #tpu.memory_space<vmem>>, %arg7: memref<1x128x128xf32, #tpu.memory_space<vmem>>, %arg8: memref<128x128xf32, #tpu.memory_space<vmem>>) attributes {dimension_semantics = [#tpu.dimension_semantics<parallel>, #tpu.dimension_semantics<parallel>, #tpu.dimension_semantics<parallel>, #tpu.dimension_semantics<arbitrary>], iteration_bounds = array<i64: 2, 1, 1, 1>, scalar_prefetch = 0 : i64, scratch_operands = 1 : i64, tpu.core_type = #tpu.core_type<tc>, window_params = [{transform_indices = @transform_0, window_bounds = array<i64: 1, 128, 128>}, {transform_indices = @transform_1, window_bounds = array<i64: 1, 128, 128>}, {transform_indices = @transform_2, window_bounds = array<i64: 1, 128, 128>}, {transform_indices = @transform_3, window_bounds = array<i64: 1, 128, 128>}]} {
    %c0_i32 = arith.constant 0 : i32
    %0 = arith.cmpi eq, %arg3, %c0_i32 : i32
    %1 = arith.extui %0 : i1 to i32
    %c0_i32_0 = arith.constant 0 : i32
    %2 = arith.cmpi ne, %1, %c0_i32_0 : i32
    scf.if %2 {
      %cst_12 = arith.constant 0.000000e+00 : f32
      %14 = vector.broadcast %cst_12 : f32 to vector<128x128xf32>
      %c0_13 = arith.constant 0 : index
      %c0_14 = arith.constant 0 : index
      %15 = vector.load %arg8[%c0_13, %c0_14] : memref<128x128xf32, #tpu.memory_space<vmem>>, vector<128x128xf32>
      tpu.vector_store %arg8[%c0_13, %c0_14], %14 {strides = array<i32>} : memref<128x128xf32, #tpu.memory_space<vmem>>, vector<128x128xf32>,
    } else {
    }
    %c0 = arith.constant 0 : index
    %c0_1 = arith.constant 0 : index
    %3 = vector.load %arg8[%c0, %c0_1] : memref<128x128xf32, #tpu.memory_space<vmem>>, vector<128x128xf32>
    %c0_2 = arith.constant 0 : index
    %c0_3 = arith.constant 0 : index
    %c0_4 = arith.constant 0 : index
    %4 = vector.load %arg4[%c0_2, %c0_3, %c0_4] : memref<1x128x128xf32, #tpu.memory_space<vmem>>, vector<1x128x128xf32>
    %5 = vector.shape_cast %4 : vector<1x128x128xf32> to vector<128x128xf32>
    %c0_5 = arith.constant 0 : index
    %c0_6 = arith.constant 0 : index
    %c0_7 = arith.constant 0 : index
    %6 = vector.load %arg5[%c0_5, %c0_6, %c0_7] : memref<1x128x128xf32, #tpu.memory_space<vmem>>, vector<1x128x128xf32>
    %7 = vector.shape_cast %6 : vector<1x128x128xf32> to vector<128x128xf32>
    %cst = arith.constant dense<0.000000e+00> : vector<128x128xf32>
    %8 = tpu.matmul %5, %7, %cst {dimension_numbers = #tpu.dot_dimension_numbers<[1], [0], [0], [1], [0, 0, 1, 1], [], []>, precision = #tpu.contract_precision<fp32>} : vector<128x128xf32>, vector<128x128xf32>, vector<128x128xf32> -> vector<128x128xf32>
    %9 = arith.addf %3, %8 : vector<128x128xf32>
    %c0_8 = arith.constant 0 : index
    %c0_9 = arith.constant 0 : index
    %10 = vector.load %arg8[%c0_8, %c0_9] : memref<128x128xf32, #tpu.memory_space<vmem>>, vector<128x128xf32>
    tpu.vector_store %arg8[%c0_8, %c0_9], %9 {strides = array<i32>} : memref<128x128xf32, #tpu.memory_space<vmem>>, vector<128x128xf32>,
    %c0_i32_10 = arith.constant 0 : i32
    %11 = arith.cmpi eq, %arg3, %c0_i32_10 : i32
    %12 = arith.extui %11 : i1 to i32
    %c0_i32_11 = arith.constant 0 : i32
    %13 = arith.cmpi ne, %12, %c0_i32_11 : i32
    scf.if %13 {
      %c0_12 = arith.constant 0 : index
      %c0_13 = arith.constant 0 : index
      %14 = vector.load %arg8[%c0_12, %c0_13] : memref<128x128xf32, #tpu.memory_space<vmem>>, vector<128x128xf32>
      %c0_14 = arith.constant 0 : index
      %c0_15 = arith.constant 0 : index
      %c0_16 = arith.constant 0 : index
      %15 = vector.load %arg6[%c0_14, %c0_15, %c0_16] : memref<1x128x128xi32, #tpu.memory_space<vmem>>, vector<1x128x128xi32>
      %16 = vector.shape_cast %15 : vector<1x128x128xi32> to vector<128x128xi32>
      %c429496730_i32 = arith.constant 429496730 : i32
      %17 = vector.broadcast %c429496730_i32 : i32 to vector<128x128xi32>
      %18 = arith.cmpi uge, %16, %17 : vector<128x128xi32>
      %19 = arith.mulf %14, %14 : vector<128x128xf32>
      %cst_17 = arith.constant 1.11111116 : f32
      %20 = vector.broadcast %cst_17 : f32 to vector<128x128xf32>
      %21 = arith.mulf %19, %20 : vector<128x128xf32>
      %cst_18 = arith.constant 0.000000e+00 : f32
      %22 = vector.broadcast %cst_18 : f32 to vector<128x128xf32>
      %23 = arith.select %18, %21, %22 : vector<128x128xi1>, vector<128x128xf32>
      %c0_19 = arith.constant 0 : index
      %c0_20 = arith.constant 0 : index
      %c0_21 = arith.constant 0 : index
      %24 = vector.load %arg7[%c0_19, %c0_20, %c0_21] : memref<1x128x128xf32, #tpu.memory_space<vmem>>, vector<1x128x128xf32>
      %25 = vector.shape_cast %24 : vector<1x128x128xf32> to vector<128x128xf32>
      %26 = vector.shape_cast %23 : vector<128x128xf32> to vector<1x128x128xf32>
      tpu.vector_store %arg7[%c0_19, %c0_20, %c0_21], %26 {strides = array<i32>} : memref<1x128x128xf32, #tpu.memory_space<vmem>>, vector<1x128x128xf32>,
    } else {
    }
    return
  }
  func.func @transform_0(%arg0: i32, %arg1: i32, %arg2: i32, %arg3: i32) -> (i32, i32, i32) {
    %c0_i32 = arith.constant 0 : i32
    return %arg0, %arg1, %arg3 : i32, i32, i32
  }
  func.func @transform_1(%arg0: i32, %arg1: i32, %arg2: i32, %arg3: i32) -> (i32, i32, i32) {
    %c0_i32 = arith.constant 0 : i32
    return %arg0, %arg3, %arg2 : i32, i32, i32
  }
  func.func @transform_2(%arg0: i32, %arg1: i32, %arg2: i32, %arg3: i32) -> (i32, i32, i32) {
    %c0_i32 = arith.constant 0 : i32
    return %arg0, %arg1, %arg2 : i32, i32, i32
  }
  func.func @transform_3(%arg0: i32, %arg1: i32, %arg2: i32, %arg3: i32) -> (i32, i32, i32) {
    %c0_i32 = arith.constant 0 : i32
    return %arg0, %arg1, %arg2 : i32, i32, i32
  }
}

</mosaic_0001>

<llo_original>
// kernel: tpu_custom_call.1
$region0: #{tpu_custom_call.1}
  #allocation0 [shape = 'u32[]', space=smem, size = 0x4, offset = 0x4, fixed_abs, tag = 'smem constant byte address 0x4 - core index']
  #allocation1 [shape = 'u32[72,128]{1,0:T(1,128)}', space=vmem, size = 0x9000, scoped, tag = 'internal scratch']
  #allocation2 [shape = 'f32[128,128]{1,0:T(8,128)}', space=vmem, size = 0x10000, scoped, tag = 'scratch operand']
  %s0 = inlined_call_operand.hbm [shape: f32[2,128,128], index: 0, kind: input, shape index: {}]
  %s1 = inlined_call_operand.hbm [shape: f32[2,128,128], index: 1, kind: input, shape index: {}]
  %s2 = inlined_call_operand.hbm [shape: u32[2,128,128], index: 2, kind: input, shape index: {}]
  %s3 = inlined_call_operand.hbm [shape: f32[2,128,128], index: 3, kind: output, shape index: {}]
  %s4 = sld [smem:[#allocation0]]
  $region65: #{tpu_custom_call.1} parent=0
    _
  %s6 = ssub.s32 1, %s4
  %s7 = scalar_select 0, %s6, %s4
  $region1: #{tpu_custom_call.1} parent=0
    #allocation3 [shape = 'u8[131072]{0}', space=vmem, size = 0x20000, scoped, tag = 'input window, operand 0']
    #allocation4 [shape = 's32[2]{0}', space=sflag, size = 0x8, scoped, tag = 'scoped memory for tpu_custom_call.1']
    #allocation5 [shape = 's32[2]{0}', space=sflag, size = 0x8, scoped, tag = 'scoped memory for tpu_custom_call.1']
    #allocation6 [shape = 'u8[131072]{0}', space=vmem, size = 0x20000, scoped, tag = 'input window, operand 1']
    #allocation7 [shape = 's32[2]{0}', space=sflag, size = 0x8, scoped, tag = 'scoped memory for tpu_custom_call.1']
    #allocation8 [shape = 'u8[131072]{0}', space=vmem, size = 0x20000, scoped, tag = 'input window, operand 2']
    #allocation9 [shape = 'u8[131072]{0}', space=vmem, size = 0x20000, scoped, tag = 'output window, operand 0']
    %8 = vsyncpa [#allocation4], 0
    %s9 = scalar_lea.sflag [#allocation4], 1
    %10 = vsyncpa %s9, 0
    %11 = vsyncpa [#allocation7], 0
    %s12 = scalar_lea.sflag [#allocation7], 1
    %13 = vsyncpa %s12, 0
    %14 = vsyncpa [#allocation5], 0
    %s15 = scalar_lea.sflag [#allocation5], 1
    %16 = vsyncpa %s15, 0
    loop: start=0, step=1, limit=4
    $region2: #{tpu_custom_call.1} parent=1 // loop_pre_header
      _
    $region3: #{tpu_custom_call.1} parent=1 // loop_header
      %s18 = sphi 0, %s22
      %p19 = scmp.ge.s32.totalorder %s18, 4
      %s25 = sphi 0, %s51
      %s26 = sphi 0, %s47
      %s27 = sphi 0, %s43
      %s28 = sphi 0, %s39
      %s29 = sphi 0, %s25
      %s30 = sphi 0, %s26
      %s31 = sphi 0, %s27
      %s32 = sphi 0, %s28
      %s33 = sphi 0, %s29
      %s34 = sphi 0, %s30
      %s35 = sphi 0, %s31
      %s36 = sphi 0, %s32
      %s58 = sphi 0, %s60
      %s61 = sphi 0, %s58
      %s62 = sphi 0, %s61
      %s78 = sphi 0, %s62
      %s88 = sphi 0, %s90
      %s91 = sphi 0, %s88
      %s92 = sphi 0, %s91
      %s108 = sphi 0, %s92
      %s118 = sphi 0, %s120
      %s121 = sphi 0, %s118
      %s122 = sphi 0, %s121
      %s138 = sphi 0, %s122
      %s148 = sphi 0, %s150
      %s151 = sphi 0, %s148
      %s152 = sphi 0, %s151
      %s168 = sphi 0, %s152
    $region4: #{tpu_custom_call.1} parent=1 // loop_header_branch
      %21 = sbr.rel (%p19) target = $region8
    $region5: #{tpu_custom_call.1} parent=1 // loop_body
      %s23 = ssub.s32 %s18, 1
      %s24 = ssub.s32 %s18, 2
      %s37 = sadd.s32 1, %s28
      %p38 = scmp.ge.s32.totalorder %s37, 1
      %s39 = scalar_select %p38, 0, %s37
      %s40 = sadd.s32 1, %s27
      %s41 = scalar_select %p38, %s40, %s27
      %p42 = scmp.ge.s32.totalorder %s41, 1
      %s43 = scalar_select %p42, 0, %s41
      %s44 = sadd.s32 1, %s26
      %s45 = scalar_select %p42, %s44, %s26
      %p46 = scmp.ge.s32.totalorder %s45, 1
      %s47 = scalar_select %p46, 0, %s45
      %s48 = sadd.s32 1, %s25
      %s49 = scalar_select %p46, %s48, %s25
      %p50 = scmp.ge.s32.totalorder %s49, 2
      %s51 = scalar_select %p50, 0, %s49
      %s52 = ssub.s32 %s25, %s51
      %s53 = ssub.s32 %s26, %s47
      %s54 = sor.u32 %s52, %s53
      %s55 = ssub.s32 %s28, %s39
      %s56 = sor.u32 %s54, %s55
      %p57 = scmp.eq.s32.totalorder %s56, 0
      %s59 = sadd.s32 %s58, 1
      %s60 = scalar_select %p57, %s58, %s59
      %p63 = pneg %p57
      %p64 = scmp.eq.s32.totalorder %s18, 1
      %p65 = por %p63, %p64
      %p66 = scmp.ne.s32.totalorder %s58, %s61
      %p67 = scmp.eq.s32.totalorder %s18, 0
      %p68 = por %p66, %p67
      %p69 = scmp.ne.s32.totalorder %s58, %s61
      %p70 = scmp.eq.s32.totalorder %s23, 1
      %p71 = por %p69, %p70
      %p72 = scmp.ne.s32.totalorder %s61, %s62
      %p73 = scmp.eq.s32.totalorder %s23, 0
      %p74 = por %p72, %p73
      %p75 = scmp.ne.s32.totalorder %s61, %s62
      %p76 = scmp.eq.s32.totalorder %s24, 1
      %p77 = por %p75, %p76
      %p79 = scmp.ne.s32.totalorder %s62, %s78
      %p80 = scmp.eq.s32.totalorder %s24, 0
      %p81 = por %p79, %p80
      %s82 = ssub.s32 %s25, %s51
      %s83 = ssub.s32 %s28, %s39
      %s84 = sor.u32 %s82, %s83
      %s85 = ssub.s32 %s27, %s43
      %s86 = sor.u32 %s84, %s85
      %p87 = scmp.eq.s32.totalorder %s86, 0
      %s89 = sadd.s32 %s88, 1
      %s90 = scalar_select %p87, %s88, %s89
      %p93 = pneg %p87
      %p94 = scmp.eq.s32.totalorder %s18, 1
      %p95 = por %p93, %p94
      %p96 = scmp.ne.s32.totalorder %s88, %s91
      %p97 = scmp.eq.s32.totalorder %s18, 0
      %p98 = por %p96, %p97
      %p99 = scmp.ne.s32.totalorder %s88, %s91
      %p100 = scmp.eq.s32.totalorder %s23, 1
      %p101 = por %p99, %p100
      %p102 = scmp.ne.s32.totalorder %s91, %s92
      %p103 = scmp.eq.s32.totalorder %s23, 0
      %p104 = por %p102, %p103
      %p105 = scmp.ne.s32.totalorder %s91, %s92
      %p106 = scmp.eq.s32.totalorder %s24, 1
      %p107 = por %p105, %p106
      %p109 = scmp.ne.s32.totalorder %s92, %s108
      %p110 = scmp.eq.s32.totalorder %s24, 0
      %p111 = por %p109, %p110
      %s112 = ssub.s32 %s25, %s51
      %s113 = ssub.s32 %s26, %s47
      %s114 = sor.u32 %s112, %s113
      %s115 = ssub.s32 %s27, %s43
      %s116 = sor.u32 %s114, %s115
      %p117 = scmp.eq.s32.totalorder %s116, 0
      %s119 = sadd.s32 %s118, 1
      %s120 = scalar_select %p117, %s118, %s119
      %p123 = pneg %p117
      %p124 = scmp.eq.s32.totalorder %s18, 1
      %p125 = por %p123, %p124
      %p126 = scmp.ne.s32.totalorder %s118, %s121
      %p127 = scmp.eq.s32.totalorder %s18, 0
      %p128 = por %p126, %p127
      %p129 = scmp.ne.s32.totalorder %s118, %s121
      %p130 = scmp.eq.s32.totalorder %s23, 1
      %p131 = por %p129, %p130
      %p132 = scmp.ne.s32.totalorder %s121, %s122
      %p133 = scmp.eq.s32.totalorder %s23, 0
      %p134 = por %p132, %p133
      %p135 = scmp.ne.s32.totalorder %s121, %s122
      %p136 = scmp.eq.s32.totalorder %s24, 1
      %p137 = por %p135, %p136
      %p139 = scmp.ne.s32.totalorder %s122, %s138
      %p140 = scmp.eq.s32.totalorder %s24, 0
      %p141 = por %p139, %p140
      %s142 = ssub.s32 %s25, %s51
      %s143 = ssub.s32 %s26, %s47
      %s144 = sor.u32 %s142, %s143
      %s145 = ssub.s32 %s27, %s43
      %s146 = sor.u32 %s144, %s145
      %p147 = scmp.eq.s32.totalorder %s146, 0
      %s149 = sadd.s32 %s148, 1
      %s150 = scalar_select %p147, %s148, %s149
      %p153 = pneg %p147
      %p154 = scmp.eq.s32.totalorder %s18, 1
      %p155 = por %p153, %p154
      %p156 = scmp.ne.s32.totalorder %s148, %s151
      %p157 = scmp.eq.s32.totalorder %s18, 0
      %p158 = por %p156, %p157
      %p159 = scmp.ne.s32.totalorder %s148, %s151
      %p160 = scmp.eq.s32.totalorder %s23, 1
      %p161 = por %p159, %p160
      %p162 = scmp.ne.s32.totalorder %s151, %s152
      %p163 = scmp.eq.s32.totalorder %s23, 0
      %p164 = por %p162, %p163
      %p165 = scmp.ne.s32.totalorder %s151, %s152
      %p166 = scmp.eq.s32.totalorder %s24, 1
      %p167 = por %p165, %p166
      %p169 = scmp.ne.s32.totalorder %s152, %s168
      %p170 = scmp.eq.s32.totalorder %s24, 0
      %p171 = por %p169, %p170
      %p172 = scmp.le.s32.totalorder 1, %s18
      %p173 = scmp.lt.s32.totalorder %s18, 3
      %p174 = pnand %p172, %p173
      %p175 = pneg %p174
      // Predicated region
      $region9: #{tpu_custom_call.1} parent=5 // pred_check
        _
      $region10: #{tpu_custom_call.1} parent=5 // pred_check_branch
        %177 = sbr.rel (%p174) target = $region12
      $region11: #{tpu_custom_call.1} parent=5 // pred_region
        %s178 = ssub.s32 %s18, 1
      $region12: #{tpu_custom_call.1} parent=5 // pred_fallthru
        _
      %p179 = scmp.lt.s32.totalorder %s18, 2
      // Predicated region
      $region13: #{tpu_custom_call.1} parent=5 // pred_check
        %p180 = pneg %p179
      $region14: #{tpu_custom_call.1} parent=5 // pred_check_branch
        %182 = sbr.rel (%p180) target = $region16
      $region15: #{tpu_custom_call.1} parent=5 // pred_region
        // Predicated region
        $region17: #{tpu_custom_call.1} parent=15 // pred_check
          %p183 = pneg %p68
        $region18: #{tpu_custom_call.1} parent=15 // pred_check_branch
          %185 = sbr.rel (%p183) target = $region20
        $region19: #{tpu_custom_call.1} parent=15 // pred_region
          %s186 = sand.u32 %s58, 1
          %s187 = scalar_lea.sflag [#allocation4], %s186
          %s188 = sand.u32 %s58, 1
          %s189 = smul.addr %s188, 128
          %s190 = scalar_lea.vmem [#allocation3], %s189
          %s191 = smul.u32 16, %s26
          %193 = vsyncadd %s187, 0
          %s194 = sadd.s32 %s28, %s191
          %s195 = smul.addr %s25, 16
          %s196 = sadd.s32 %s194, %s195
          %s197 = smul.addr %s196, 8
          %s198 = scalar_lea.hbm %s0, %s197
          %s199 = sshll.u32 %s198, 4
          %s200 = int_to_ptr.hbm [resolvable:$true] %s199
          %s201 = sshll.u32 %s190, 4
          %s202 = int_to_ptr.vmem [resolvable:$true] %s201
          %207 = dma.hbm_to_vmem [thread:$0]  %s200, 2048, %s202, %s187, 128, 128, 8
        $region20: #{tpu_custom_call.1} parent=15 // pred_fallthru
          _
        // Predicated region
        $region21: #{tpu_custom_call.1} parent=15 // pred_check
          %p208 = pneg %p98
        $region22: #{tpu_custom_call.1} parent=15 // pred_check_branch
          %210 = sbr.rel (%p208) target = $region24
        $region23: #{tpu_custom_call.1} parent=15 // pred_region
          %s211 = sand.u32 %s18, 1
          %s212 = scalar_lea.sflag [#allocation7], %s211
          %s213 = sand.u32 %s88, 1
          %s214 = smul.addr %s213, 128
          %s215 = scalar_lea.vmem [#allocation6], %s214
          %s216 = smul.u32 16, %s28
          %218 = vsyncadd %s212, 0
          %s219 = sadd.s32 %s27, %s216
          %s220 = smul.addr %s25, 16
          %s221 = sadd.s32 %s219, %s220
          %s222 = smul.addr %s221, 8
          %s223 = scalar_lea.hbm %s1, %s222
          %s224 = sshll.u32 %s223, 4
          %s225 = int_to_ptr.hbm [resolvable:$true] %s224
          %s226 = sshll.u32 %s215, 4
          %s227 = int_to_ptr.vmem [resolvable:$true] %s226
          %232 = dma.hbm_to_vmem [thread:$0]  %s225, 2048, %s227, %s212, 128, 128, 8
        $region24: #{tpu_custom_call.1} parent=15 // pred_fallthru
          _
        // Predicated region
        $region25: #{tpu_custom_call.1} parent=15 // pred_check
          %p233 = pneg %p128
        $region26: #{tpu_custom_call.1} parent=15 // pred_check_branch
          %235 = sbr.rel (%p233) target = $region28
        $region27: #{tpu_custom_call.1} parent=15 // pred_region
          %s236 = sand.u32 %s18, 1
          %s237 = scalar_lea.sflag [#allocation7], %s236
          %s238 = sand.u32 %s118, 1
          %s239 = smul.addr %s238, 128
          %s240 = scalar_lea.vmem [#allocation8], %s239
          %s241 = smul.u32 16, %s26
          %243 = vsyncadd %s237, 0
          %s244 = sadd.s32 %s27, %s241
          %s245 = smul.addr %s25, 16
          %s246 = sadd.s32 %s244, %s245
          %s247 = smul.addr %s246, 8
          %s248 = scalar_lea.hbm %s2, %s247
          %s249 = sshll.u32 %s248, 4
          %s250 = int_to_ptr.hbm [resolvable:$true] %s249
          %s251 = sshll.u32 %s240, 4
          %s252 = int_to_ptr.vmem [resolvable:$true] %s251
          %257 = dma.hbm_to_vmem [thread:$0]  %s250, 2048, %s252, %s237, 128, 128, 8
        $region28: #{tpu_custom_call.1} parent=15 // pred_fallthru
          _
      $region16: #{tpu_custom_call.1} parent=5 // pred_fallthru
        _
      %p258 = scmp.le.s32.totalorder 1, %s18
      %p259 = scmp.lt.s32.totalorder %s18, 3
      %p260 = pnand %p258, %p259
      %p261 = pneg %p260
      // Predicated region
      $region29: #{tpu_custom_call.1} parent=5 // pred_check
        _
      $region30: #{tpu_custom_call.1} parent=5 // pred_check_branch
        %263 = sbr.rel (%p260) target = $region32
      $region31: #{tpu_custom_call.1} parent=5 // pred_region
        %s264 = ssub.s32 %s18, 1
        %s265 = sand.u32 %s61, 1
        %s266 = scalar_lea.sflag [#allocation4], %s265
        %s267 = sand.u32 %s61, 1
        %s268 = smul.addr %s267, 128
        %s269 = scalar_lea.vmem [#allocation3], %s268
        // Predicated region
        $region33: #{tpu_custom_call.1} parent=31 // pred_check
          %p270 = pneg %p74
        $region34: #{tpu_custom_call.1} parent=31 // pred_check_branch
          %272 = sbr.rel (%p270) target = $region36
        $region35: #{tpu_custom_call.1} parent=31 // pred_region
          %274 = dma.done %s266, 2048
        $region36: #{tpu_custom_call.1} parent=31 // pred_fallthru
          _
        %s275 = sand.u32 %s23, 1
        %s276 = scalar_lea.sflag [#allocation7], %s275
        %s277 = sand.u32 %s91, 1
        %s278 = smul.addr %s277, 128
        %s279 = scalar_lea.vmem [#allocation6], %s278
        // Predicated region
        $region37: #{tpu_custom_call.1} parent=31 // pred_check
          %p280 = pneg %p104
        $region38: #{tpu_custom_call.1} parent=31 // pred_check_branch
          %282 = sbr.rel (%p280) target = $region40
        $region39: #{tpu_custom_call.1} parent=31 // pred_region
          %284 = dma.done %s276, 2048
        $region40: #{tpu_custom_call.1} parent=31 // pred_fallthru
          _
        %s285 = sand.u32 %s23, 1
        %s286 = scalar_lea.sflag [#allocation7], %s285
        %s287 = sand.u32 %s121, 1
        %s288 = smul.addr %s287, 128
        %s289 = scalar_lea.vmem [#allocation8], %s288
        // Predicated region
        $region41: #{tpu_custom_call.1} parent=31 // pred_check
          %p290 = pneg %p134
        $region42: #{tpu_custom_call.1} parent=31 // pred_check_branch
          %292 = sbr.rel (%p290) target = $region44
        $region43: #{tpu_custom_call.1} parent=31 // pred_region
          %294 = dma.done %s286, 2048
        $region44: #{tpu_custom_call.1} parent=31 // pred_fallthru
          _
        %s295 = sand.u32 %s61, 1
        %s296 = scalar_lea.sflag [#allocation4], %s295
        %s297 = sand.u32 %s61, 1
        %s298 = smul.addr %s297, 128
        %s299 = scalar_lea.vmem [#allocation3], %s298
        %p300 = pneg %p74
        %p301 = pneg %p71
        %s302 = sand.u32 %s23, 1
        %s303 = scalar_lea.sflag [#allocation7], %s302
        %s304 = sand.u32 %s91, 1
        %s305 = smul.addr %s304, 128
        %s306 = scalar_lea.vmem [#allocation6], %s305
        %p307 = pneg %p104
        %p308 = pneg %p101
        %s309 = sand.u32 %s23, 1
        %s310 = scalar_lea.sflag [#allocation7], %s309
        %s311 = sand.u32 %s121, 1
        %s312 = smul.addr %s311, 128
        %s313 = scalar_lea.vmem [#allocation8], %s312
        %p314 = pneg %p134
        %p315 = pneg %p131
        %p316 = pneg %p164
        %p317 = pneg %p161
        %s318 = sand.u32 %s151, 1
        %s319 = scalar_lea.sflag [#allocation5], %s318
        %s320 = sand.u32 %s151, 1
        %s321 = smul.addr %s320, 128
        %s322 = scalar_lea.vmem [#allocation9], %s321
        %s323 = smul.u32 16, %s30
        %s324 = smul.u32 16, %s32
        %s325 = smul.u32 16, %s30
        %s326 = smul.u32 16, %s30
        %p327 = scmp.eq.s32.totalorder %s32, 0
        // Predicated region
        $region45: #{tpu_custom_call.1} parent=31 // pred_check
          %p328 = pneg %p327
        $region46: #{tpu_custom_call.1} parent=31 // pred_check_branch
          %330 = sbr.rel (%p328) target = $region48
        $region47: #{tpu_custom_call.1} parent=31 // pred_region
          %331 = vst [vmem:[#allocation2] sm:$0xff] 0.0
          %332 = vst [vmem:[#allocation2 + $0x8] sm:$0xff] 0.0
          %333 = vst [vmem:[#allocation2 + $0x10] sm:$0xff] 0.0
          %334 = vst [vmem:[#allocation2 + $0x18] sm:$0xff] 0.0
          %335 = vst [vmem:[#allocation2 + $0x20] sm:$0xff] 0.0
          %336 = vst [vmem:[#allocation2 + $0x28] sm:$0xff] 0.0
          %337 = vst [vmem:[#allocation2 + $0x30] sm:$0xff] 0.0
          %338 = vst [vmem:[#allocation2 + $0x38] sm:$0xff] 0.0
          %339 = vst [vmem:[#allocation2 + $0x40] sm:$0xff] 0.0
          %340 = vst [vmem:[#allocation2 + $0x48] sm:$0xff] 0.0
          %341 = vst [vmem:[#allocation2 + $0x50] sm:$0xff] 0.0
          %342 = vst [vmem:[#allocation2 + $0x58] sm:$0xff] 0.0
          %343 = vst [vmem:[#allocation2 + $0x60] sm:$0xff] 0.0
          %344 = vst [vmem:[#allocation2 + $0x68] sm:$0xff] 0.0
          %345 = vst [vmem:[#allocation2 + $0x70] sm:$0xff] 0.0
          %346 = vst [vmem:[#allocation2 + $0x78] sm:$0xff] 0.0
        $region48: #{tpu_custom_call.1} parent=31 // pred_fallthru
          _
        %v347 = vld [vmem:[#allocation2] sm:$0xff]
        %v348 = vld [vmem:[#allocation2 + $0x8] sm:$0xff]
        %v349 = vld [vmem:[#allocation2 + $0x10] sm:$0xff]
        %v350 = vld [vmem:[#allocation2 + $0x18] sm:$0xff]
        %v351 = vld [vmem:[#allocation2 + $0x20] sm:$0xff]
        %v352 = vld [vmem:[#allocation2 + $0x28] sm:$0xff]
        %v353 = vld [vmem:[#allocation2 + $0x30] sm:$0xff]
        %v354 = vld [vmem:[#allocation2 + $0x38] sm:$0xff]
        %v355 = vld [vmem:[#allocation2 + $0x40] sm:$0xff]
        %v356 = vld [vmem:[#allocation2 + $0x48] sm:$0xff]
        %v357 = vld [vmem:[#allocation2 + $0x50] sm:$0xff]
        %v358 = vld [vmem:[#allocation2 + $0x58] sm:$0xff]
        %v359 = vld [vmem:[#allocation2 + $0x60] sm:$0xff]
        %v360 = vld [vmem:[#allocation2 + $0x68] sm:$0xff]
        %v361 = vld [vmem:[#allocation2 + $0x70] sm:$0xff]
        %v362 = vld [vmem:[#allocation2 + $0x78] sm:$0xff]
        %v363 = vld [vmem:[%s269] sm:$0xff]
        %v364 = vld [vmem:[%s269 + $0x8] sm:$0xff]
        %v365 = vld [vmem:[%s269 + $0x10] sm:$0xff]
        %v366 = vld [vmem:[%s269 + $0x18] sm:$0xff]
        %v367 = vld [vmem:[%s269 + $0x20] sm:$0xff]
        %v368 = vld [vmem:[%s269 + $0x28] sm:$0xff]
        %v369 = vld [vmem:[%s269 + $0x30] sm:$0xff]
        %v370 = vld [vmem:[%s269 + $0x38] sm:$0xff]
        %v371 = vld [vmem:[%s269 + $0x40] sm:$0xff]
        %v372 = vld [vmem:[%s269 + $0x48] sm:$0xff]
        %v373 = vld [vmem:[%s269 + $0x50] sm:$0xff]
        %v374 = vld [vmem:[%s269 + $0x58] sm:$0xff]
        %v375 = vld [vmem:[%s269 + $0x60] sm:$0xff]
        %v376 = vld [vmem:[%s269 + $0x68] sm:$0xff]
        %v377 = vld [vmem:[%s269 + $0x70] sm:$0xff]
        %v378 = vld [vmem:[%s269 + $0x78] sm:$0xff]
        %v379 = vld [vmem:[%s279] sm:$0xff]
        %v380 = vld [vmem:[%s279 + $0x8] sm:$0xff]
        %v381 = vld [vmem:[%s279 + $0x10] sm:$0xff]
        %v382 = vld [vmem:[%s279 + $0x18] sm:$0xff]
        %v383 = vld [vmem:[%s279 + $0x20] sm:$0xff]
        %v384 = vld [vmem:[%s279 + $0x28] sm:$0xff]
        %v385 = vld [vmem:[%s279 + $0x30] sm:$0xff]
        %v386 = vld [vmem:[%s279 + $0x38] sm:$0xff]
        %v387 = vld [vmem:[%s279 + $0x40] sm:$0xff]
        %v388 = vld [vmem:[%s279 + $0x48] sm:$0xff]
        %v389 = vld [vmem:[%s279 + $0x50] sm:$0xff]
        %v390 = vld [vmem:[%s279 + $0x58] sm:$0xff]
        %v391 = vld [vmem:[%s279 + $0x60] sm:$0xff]
        %v392 = vld [vmem:[%s279 + $0x68] sm:$0xff]
        %v393 = vld [vmem:[%s279 + $0x70] sm:$0xff]
        %v394 = vld [vmem:[%s279 + $0x78] sm:$0xff]
        %v395 = vand.u32 %v394, 4294901760
        %396 = vmatpush.msra.mxu0 %v395
        %v397 = vand.u32 %v393, 4294901760
        %398 = vmatpush.msra.mxu0 %v397
        %v399 = vand.u32 %v392, 4294901760
        %400 = vmatpush.msra.mxu0 %v399
        %v401 = vand.u32 %v391, 4294901760
        %402 = vmatpush.msra.mxu0 %v401
        %v403 = vand.u32 %v390, 4294901760
        %404 = vmatpush.msra.mxu0 %v403
        %v405 = vand.u32 %v389, 4294901760
        %406 = vmatpush.msra.mxu0 %v405
        %v407 = vand.u32 %v388, 4294901760
        %408 = vmatpush.msra.mxu0 %v407
        %v409 = vand.u32 %v387, 4294901760
        %410 = vmatpush.msra.mxu0 %v409
        %v411 = vand.u32 %v386, 4294901760
        %412 = vmatpush.msra.mxu0 %v411
        %v413 = vand.u32 %v385, 4294901760
        %414 = vmatpush.msra.mxu0 %v413
        %v415 = vand.u32 %v384, 4294901760
        %416 = vmatpush.msra.mxu0 %v415
        %v417 = vand.u32 %v383, 4294901760
        %418 = vmatpush.msra.mxu0 %v417
        %v419 = vand.u32 %v382, 4294901760
        %420 = vmatpush.msra.mxu0 %v419
        %v421 = vand.u32 %v381, 4294901760
        %422 = vmatpush.msra.mxu0 %v421
        %v423 = vand.u32 %v380, 4294901760
        %424 = vmatpush.msra.mxu0 %v423
        %v425 = vand.u32 %v379, 4294901760
        %426 = vmatpush.msra.mxu0 %v425
        %v427 = vand.u32 %v363, 4294901760
        %v428 = vsub.f32 %v363, %v427
        %v429 = vand.u32 %v428, 4294901760
        %v430 = vsub.f32 %v428, %v429
        %v431 = vand.u32 %v430, 4294901760
        %432 = vmatmul.f32.gmra.mxu0 %v431
        %v433 = vpop.f32.mrf.mxu0
        %v434 = vadd.f32 0.0, %v433
        %v435 = vand.u32 %v364, 4294901760
        %v436 = vsub.f32 %v364, %v435
        %v437 = vand.u32 %v436, 4294901760
        %v438 = vsub.f32 %v436, %v437
        %v439 = vand.u32 %v438, 4294901760
        %440 = vmatmul.f32.gmra.mxu0 %v439
        %v441 = vpop.f32.mrf.mxu0
        %v442 = vadd.f32 0.0, %v441
        %v443 = vand.u32 %v365, 4294901760
        %v444 = vsub.f32 %v365, %v443
        %v445 = vand.u32 %v444, 4294901760
        %v446 = vsub.f32 %v444, %v445
        %v447 = vand.u32 %v446, 4294901760
        %448 = vmatmul.f32.gmra.mxu0 %v447
        %v449 = vpop.f32.mrf.mxu0
        %v450 = vadd.f32 0.0, %v449
        %v451 = vand.u32 %v366, 4294901760
        %v452 = vsub.f32 %v366, %v451
        %v453 = vand.u32 %v452, 4294901760
        %v454 = vsub.f32 %v452, %v453
        %v455 = vand.u32 %v454, 4294901760
        %456 = vmatmul.f32.gmra.mxu0 %v455
        %v457 = vpop.f32.mrf.mxu0
        %v458 = vadd.f32 0.0, %v457
        %v459 = vand.u32 %v367, 4294901760
        %v460 = vsub.f32 %v367, %v459
        %v461 = vand.u32 %v460, 4294901760
        %v462 = vsub.f32 %v460, %v461
        %v463 = vand.u32 %v462, 4294901760
        %464 = vmatmul.f32.gmra.mxu0 %v463
        %v465 = vpop.f32.mrf.mxu0
        %v466 = vadd.f32 0.0, %v465
        %v467 = vand.u32 %v368, 4294901760
        %v468 = vsub.f32 %v368, %v467
        %v469 = vand.u32 %v468, 4294901760
        %v470 = vsub.f32 %v468, %v469
        %v471 = vand.u32 %v470, 4294901760
        %472 = vmatmul.f32.gmra.mxu0 %v471
        %v473 = vpop.f32.mrf.mxu0
        %v474 = vadd.f32 0.0, %v473
        %v475 = vand.u32 %v369, 4294901760
        %v476 = vsub.f32 %v369, %v475
        %v477 = vand.u32 %v476, 4294901760
        %v478 = vsub.f32 %v476, %v477
        %v479 = vand.u32 %v478, 4294901760
        %480 = vmatmul.f32.gmra.mxu0 %v479
        %v481 = vpop.f32.mrf.mxu0
        %v482 = vadd.f32 0.0, %v481
        %v483 = vand.u32 %v370, 4294901760
        %v484 = vsub.f32 %v370, %v483
        %v485 = vand.u32 %v484, 4294901760
        %v486 = vsub.f32 %v484, %v485
        %v487 = vand.u32 %v486, 4294901760
        %488 = vmatmul.f32.gmra.mxu0 %v487
        %v489 = vpop.f32.mrf.mxu0
        %v490 = vadd.f32 0.0, %v489
        %v491 = vand.u32 %v371, 4294901760
        %v492 = vsub.f32 %v371, %v491
        %v493 = vand.u32 %v492, 4294901760
        %v494 = vsub.f32 %v492, %v493
        %v495 = vand.u32 %v494, 4294901760
        %496 = vmatmul.f32.gmra.mxu0 %v495
        %v497 = vpop.f32.mrf.mxu0
        %v498 = vadd.f32 0.0, %v497
        %v499 = vand.u32 %v372, 4294901760
        %v500 = vsub.f32 %v372, %v499
        %v501 = vand.u32 %v500, 4294901760
        %v502 = vsub.f32 %v500, %v501
        %v503 = vand.u32 %v502, 4294901760
        %504 = vmatmul.f32.gmra.mxu0 %v503
        %v505 = vpop.f32.mrf.mxu0
        %v506 = vadd.f32 0.0, %v505
        %v507 = vand.u32 %v373, 4294901760
        %v508 = vsub.f32 %v373, %v507
        %v509 = vand.u32 %v508, 4294901760
        %v510 = vsub.f32 %v508, %v509
        %v511 = vand.u32 %v510, 4294901760
        %512 = vmatmul.f32.gmra.mxu0 %v511
        %v513 = vpop.f32.mrf.mxu0
        %v514 = vadd.f32 0.0, %v513
        %v515 = vand.u32 %v374, 4294901760
        %v516 = vsub.f32 %v374, %v515
        %v517 = vand.u32 %v516, 4294901760
        %v518 = vsub.f32 %v516, %v517
        %v519 = vand.u32 %v518, 4294901760
        %520 = vmatmul.f32.gmra.mxu0 %v519
        %v521 = vpop.f32.mrf.mxu0
        %v522 = vadd.f32 0.0, %v521
        %v523 = vand.u32 %v375, 4294901760
        %v524 = vsub.f32 %v375, %v523
        %v525 = vand.u32 %v524, 4294901760
        %v526 = vsub.f32 %v524, %v525
        %v527 = vand.u32 %v526, 4294901760
        %528 = vmatmul.f32.gmra.mxu0 %v527
        %v529 = vpop.f32.mrf.mxu0
        %v530 = vadd.f32 0.0, %v529
        %v531 = vand.u32 %v376, 4294901760
        %v532 = vsub.f32 %v376, %v531
        %v533 = vand.u32 %v532, 4294901760
        %v534 = vsub.f32 %v532, %v533
        %v535 = vand.u32 %v534, 4294901760
        %536 = vmatmul.f32.gmra.mxu0 %v535
        %v537 = vpop.f32.mrf.mxu0
        %v538 = vadd.f32 0.0, %v537
        %v539 = vand.u32 %v377, 4294901760
        %v540 = vsub.f32 %v377, %v539
        %v541 = vand.u32 %v540, 4294901760
        %v542 = vsub.f32 %v540, %v541
        %v543 = vand.u32 %v542, 4294901760
        %544 = vmatmul.f32.gmra.mxu0 %v543
        %v545 = vpop.f32.mrf.mxu0
        %v546 = vadd.f32 0.0, %v545
        %v547 = vand.u32 %v378, 4294901760
        %v548 = vsub.f32 %v378, %v547
        %v549 = vand.u32 %v548, 4294901760
        %v550 = vsub.f32 %v548, %v549
        %v551 = vand.u32 %v550, 4294901760
        %552 = vmatmul.f32.gmra.mxu0 %v551
        %v553 = vpop.f32.mrf.mxu0
        %v554 = vadd.f32 0.0, %v553
        %555 = vdwg.mxu0
        %v556 = vand.u32 %v394, 4294901760
        %v557 = vsub.f32 %v394, %v556
        %v558 = vand.u32 %v557, 4294901760
        %v559 = vsub.f32 %v557, %v558
        %v560 = vand.u32 %v559, 4294901760
        %561 = vmatpush.msra.mxu0 %v560
        %v562 = vand.u32 %v393, 4294901760
        %v563 = vsub.f32 %v393, %v562
        %v564 = vand.u32 %v563, 4294901760
        %v565 = vsub.f32 %v563, %v564
        %v566 = vand.u32 %v565, 4294901760
        %567 = vmatpush.msra.mxu0 %v566
        %v568 = vand.u32 %v392, 4294901760
        %v569 = vsub.f32 %v392, %v568
        %v570 = vand.u32 %v569, 4294901760
        %v571 = vsub.f32 %v569, %v570
        %v572 = vand.u32 %v571, 4294901760
        %573 = vmatpush.msra.mxu0 %v572
        %v574 = vand.u32 %v391, 4294901760
        %v575 = vsub.f32 %v391, %v574
        %v576 = vand.u32 %v575, 4294901760
        %v577 = vsub.f32 %v575, %v576
        %v578 = vand.u32 %v577, 4294901760
        %579 = vmatpush.msra.mxu0 %v578
        %v580 = vand.u32 %v390, 4294901760
        %v581 = vsub.f32 %v390, %v580
        %v582 = vand.u32 %v581, 4294901760
        %v583 = vsub.f32 %v581, %v582
        %v584 = vand.u32 %v583, 4294901760
        %585 = vmatpush.msra.mxu0 %v584
        %v586 = vand.u32 %v389, 4294901760
        %v587 = vsub.f32 %v389, %v586
        %v588 = vand.u32 %v587, 4294901760
        %v589 = vsub.f32 %v587, %v588
        %v590 = vand.u32 %v589, 4294901760
        %591 = vmatpush.msra.mxu0 %v590
        %v592 = vand.u32 %v388, 4294901760
        %v593 = vsub.f32 %v388, %v592
        %v594 = vand.u32 %v593, 4294901760
        %v595 = vsub.f32 %v593, %v594
        %v596 = vand.u32 %v595, 4294901760
        %597 = vmatpush.msra.mxu0 %v596
        %v598 = vand.u32 %v387, 4294901760
        %v599 = vsub.f32 %v387, %v598
        %v600 = vand.u32 %v599, 4294901760
        %v601 = vsub.f32 %v599, %v600
        %v602 = vand.u32 %v601, 4294901760
        %603 = vmatpush.msra.mxu0 %v602
        %v604 = vand.u32 %v386, 4294901760
        %v605 = vsub.f32 %v386, %v604
        %v606 = vand.u32 %v605, 4294901760
        %v607 = vsub.f32 %v605, %v606
        %v608 = vand.u32 %v607, 4294901760
        %609 = vmatpush.msra.mxu0 %v608
        %v610 = vand.u32 %v385, 4294901760
        %v611 = vsub.f32 %v385, %v610
        %v612 = vand.u32 %v611, 4294901760
        %v613 = vsub.f32 %v611, %v612
        %v614 = vand.u32 %v613, 4294901760
        %615 = vmatpush.msra.mxu0 %v614
        %v616 = vand.u32 %v384, 4294901760
        %v617 = vsub.f32 %v384, %v616
        %v618 = vand.u32 %v617, 4294901760
        %v619 = vsub.f32 %v617, %v618
        %v620 = vand.u32 %v619, 4294901760
        %621 = vmatpush.msra.mxu0 %v620
        %v622 = vand.u32 %v383, 4294901760
        %v623 = vsub.f32 %v383, %v622
        %v624 = vand.u32 %v623, 4294901760
        %v625 = vsub.f32 %v623, %v624
        %v626 = vand.u32 %v625, 4294901760
        %627 = vmatpush.msra.mxu0 %v626
        %v628 = vand.u32 %v382, 4294901760
        %v629 = vsub.f32 %v382, %v628
        %v630 = vand.u32 %v629, 4294901760
        %v631 = vsub.f32 %v629, %v630
        %v632 = vand.u32 %v631, 4294901760
        %633 = vmatpush.msra.mxu0 %v632
        %v634 = vand.u32 %v381, 4294901760
        %v635 = vsub.f32 %v381, %v634
        %v636 = vand.u32 %v635, 4294901760
        %v637 = vsub.f32 %v635, %v636
        %v638 = vand.u32 %v637, 4294901760
        %639 = vmatpush.msra.mxu0 %v638
        %v640 = vand.u32 %v380, 4294901760
        %v641 = vsub.f32 %v380, %v640
        %v642 = vand.u32 %v641, 4294901760
        %v643 = vsub.f32 %v641, %v642
        %v644 = vand.u32 %v643, 4294901760
        %645 = vmatpush.msra.mxu0 %v644
        %v646 = vand.u32 %v379, 4294901760
        %v647 = vsub.f32 %v379, %v646
        %v648 = vand.u32 %v647, 4294901760
        %v649 = vsub.f32 %v647, %v648
        %v650 = vand.u32 %v649, 4294901760
        %651 = vmatpush.msra.mxu0 %v650
        %v652 = vand.u32 %v363, 4294901760
        %653 = vmatmul.f32.gmra.mxu0 %v652
        %v654 = vpop.f32.mrf.mxu0
        %v655 = vadd.f32 %v434, %v654
        %v656 = vand.u32 %v364, 4294901760
        %657 = vmatmul.f32.gmra.mxu0 %v656
        %v658 = vpop.f32.mrf.mxu0
        %v659 = vadd.f32 %v442, %v658
        %v660 = vand.u32 %v365, 4294901760
        %661 = vmatmul.f32.gmra.mxu0 %v660
        %v662 = vpop.f32.mrf.mxu0
        %v663 = vadd.f32 %v450, %v662
        %v664 = vand.u32 %v366, 4294901760
        %665 = vmatmul.f32.gmra.mxu0 %v664
        %v666 = vpop.f32.mrf.mxu0
        %v667 = vadd.f32 %v458, %v666
        %v668 = vand.u32 %v367, 4294901760
        %669 = vmatmul.f32.gmra.mxu0 %v668
        %v670 = vpop.f32.mrf.mxu0
        %v671 = vadd.f32 %v466, %v670
        %v672 = vand.u32 %v368, 4294901760
        %673 = vmatmul.f32.gmra.mxu0 %v672
        %v674 = vpop.f32.mrf.mxu0
        %v675 = vadd.f32 %v474, %v674
        %v676 = vand.u32 %v369, 4294901760
        %677 = vmatmul.f32.gmra.mxu0 %v676
        %v678 = vpop.f32.mrf.mxu0
        %v679 = vadd.f32 %v482, %v678
        %v680 = vand.u32 %v370, 4294901760
        %681 = vmatmul.f32.gmra.mxu0 %v680
        %v682 = vpop.f32.mrf.mxu0
        %v683 = vadd.f32 %v490, %v682
        %v684 = vand.u32 %v371, 4294901760
        %685 = vmatmul.f32.gmra.mxu0 %v684
        %v686 = vpop.f32.mrf.mxu0
        %v687 = vadd.f32 %v498, %v686
        %v688 = vand.u32 %v372, 4294901760
        %689 = vmatmul.f32.gmra.mxu0 %v688
        %v690 = vpop.f32.mrf.mxu0
        %v691 = vadd.f32 %v506, %v690
        %v692 = vand.u32 %v373, 4294901760
        %693 = vmatmul.f32.gmra.mxu0 %v692
        %v694 = vpop.f32.mrf.mxu0
        %v695 = vadd.f32 %v514, %v694
        %v696 = vand.u32 %v374, 4294901760
        %697 = vmatmul.f32.gmra.mxu0 %v696
        %v698 = vpop.f32.mrf.mxu0
        %v699 = vadd.f32 %v522, %v698
        %v700 = vand.u32 %v375, 4294901760
        %701 = vmatmul.f32.gmra.mxu0 %v700
        %v702 = vpop.f32.mrf.mxu0
        %v703 = vadd.f32 %v530, %v702
        %v704 = vand.u32 %v376, 4294901760
        %705 = vmatmul.f32.gmra.mxu0 %v704
        %v706 = vpop.f32.mrf.mxu0
        %v707 = vadd.f32 %v538, %v706
        %v708 = vand.u32 %v377, 4294901760
        %709 = vmatmul.f32.gmra.mxu0 %v708
        %v710 = vpop.f32.mrf.mxu0
        %v711 = vadd.f32 %v546, %v710
        %v712 = vand.u32 %v378, 4294901760
        %713 = vmatmul.f32.gmra.mxu0 %v712
        %v714 = vpop.f32.mrf.mxu0
        %v715 = vadd.f32 %v554, %v714
        %716 = vdwg.mxu0
        %v717 = vand.u32 %v394, 4294901760
        %v718 = vsub.f32 %v394, %v717
        %719 = vmatpush.msra.mxu0 %v718
        %v720 = vand.u32 %v393, 4294901760
        %v721 = vsub.f32 %v393, %v720
        %722 = vmatpush.msra.mxu0 %v721
        %v723 = vand.u32 %v392, 4294901760
        %v724 = vsub.f32 %v392, %v723
        %725 = vmatpush.msra.mxu0 %v724
        %v726 = vand.u32 %v391, 4294901760
        %v727 = vsub.f32 %v391, %v726
        %728 = vmatpush.msra.mxu0 %v727
        %v729 = vand.u32 %v390, 4294901760
        %v730 = vsub.f32 %v390, %v729
        %731 = vmatpush.msra.mxu0 %v730
        %v732 = vand.u32 %v389, 4294901760
        %v733 = vsub.f32 %v389, %v732
        %734 = vmatpush.msra.mxu0 %v733
        %v735 = vand.u32 %v388, 4294901760
        %v736 = vsub.f32 %v388, %v735
        %737 = vmatpush.msra.mxu0 %v736
        %v738 = vand.u32 %v387, 4294901760
        %v739 = vsub.f32 %v387, %v738
        %740 = vmatpush.msra.mxu0 %v739
        %v741 = vand.u32 %v386, 4294901760
        %v742 = vsub.f32 %v386, %v741
        %743 = vmatpush.msra.mxu0 %v742
        %v744 = vand.u32 %v385, 4294901760
        %v745 = vsub.f32 %v385, %v744
        %746 = vmatpush.msra.mxu0 %v745
        %v747 = vand.u32 %v384, 4294901760
        %v748 = vsub.f32 %v384, %v747
        %749 = vmatpush.msra.mxu0 %v748
        %v750 = vand.u32 %v383, 4294901760
        %v751 = vsub.f32 %v383, %v750
        %752 = vmatpush.msra.mxu0 %v751
        %v753 = vand.u32 %v382, 4294901760
        %v754 = vsub.f32 %v382, %v753
        %755 = vmatpush.msra.mxu0 %v754
        %v756 = vand.u32 %v381, 4294901760
        %v757 = vsub.f32 %v381, %v756
        %758 = vmatpush.msra.mxu0 %v757
        %v759 = vand.u32 %v380, 4294901760
        %v760 = vsub.f32 %v380, %v759
        %761 = vmatpush.msra.mxu0 %v760
        %v762 = vand.u32 %v379, 4294901760
        %v763 = vsub.f32 %v379, %v762
        %764 = vmatpush.msra.mxu0 %v763
        %v765 = vand.u32 %v363, 4294901760
        %v766 = vsub.f32 %v363, %v765
        %767 = vmatmul.f32.gmra.mxu0 %v766
        %v768 = vpop.f32.mrf.mxu0
        %v769 = vadd.f32 %v655, %v768
        %v770 = vand.u32 %v364, 4294901760
        %v771 = vsub.f32 %v364, %v770
        %772 = vmatmul.f32.gmra.mxu0 %v771
        %v773 = vpop.f32.mrf.mxu0
        %v774 = vadd.f32 %v659, %v773
        %v775 = vand.u32 %v365, 4294901760
        %v776 = vsub.f32 %v365, %v775
        %777 = vmatmul.f32.gmra.mxu0 %v776
        %v778 = vpop.f32.mrf.mxu0
        %v779 = vadd.f32 %v663, %v778
        %v780 = vand.u32 %v366, 4294901760
        %v781 = vsub.f32 %v366, %v780
        %782 = vmatmul.f32.gmra.mxu0 %v781
        %v783 = vpop.f32.mrf.mxu0
        %v784 = vadd.f32 %v667, %v783
        %v785 = vand.u32 %v367, 4294901760
        %v786 = vsub.f32 %v367, %v785
        %787 = vmatmul.f32.gmra.mxu0 %v786
        %v788 = vpop.f32.mrf.mxu0
        %v789 = vadd.f32 %v671, %v788
        %v790 = vand.u32 %v368, 4294901760
        %v791 = vsub.f32 %v368, %v790
        %792 = vmatmul.f32.gmra.mxu0 %v791
        %v793 = vpop.f32.mrf.mxu0
        %v794 = vadd.f32 %v675, %v793
        %v795 = vand.u32 %v369, 4294901760
        %v796 = vsub.f32 %v369, %v795
        %797 = vmatmul.f32.gmra.mxu0 %v796
        %v798 = vpop.f32.mrf.mxu0
        %v799 = vadd.f32 %v679, %v798
        %v800 = vand.u32 %v370, 4294901760
        %v801 = vsub.f32 %v370, %v800
        %802 = vmatmul.f32.gmra.mxu0 %v801
        %v803 = vpop.f32.mrf.mxu0
        %v804 = vadd.f32 %v683, %v803
        %v805 = vand.u32 %v371, 4294901760
        %v806 = vsub.f32 %v371, %v805
        %807 = vmatmul.f32.gmra.mxu0 %v806
        %v808 = vpop.f32.mrf.mxu0
        %v809 = vadd.f32 %v687, %v808
        %v810 = vand.u32 %v372, 4294901760
        %v811 = vsub.f32 %v372, %v810
        %812 = vmatmul.f32.gmra.mxu0 %v811
        %v813 = vpop.f32.mrf.mxu0
        %v814 = vadd.f32 %v691, %v813
        %v815 = vand.u32 %v373, 4294901760
        %v816 = vsub.f32 %v373, %v815
        %817 = vmatmul.f32.gmra.mxu0 %v816
        %v818 = vpop.f32.mrf.mxu0
        %v819 = vadd.f32 %v695, %v818
        %v820 = vand.u32 %v374, 4294901760
        %v821 = vsub.f32 %v374, %v820
        %822 = vmatmul.f32.gmra.mxu0 %v821
        %v823 = vpop.f32.mrf.mxu0
        %v824 = vadd.f32 %v699, %v823
        %v825 = vand.u32 %v375, 4294901760
        %v826 = vsub.f32 %v375, %v825
        %827 = vmatmul.f32.gmra.mxu0 %v826
        %v828 = vpop.f32.mrf.mxu0
        %v829 = vadd.f32 %v703, %v828
        %v830 = vand.u32 %v376, 4294901760
        %v831 = vsub.f32 %v376, %v830
        %832 = vmatmul.f32.gmra.mxu0 %v831
        %v833 = vpop.f32.mrf.mxu0
        %v834 = vadd.f32 %v707, %v833
        %v835 = vand.u32 %v377, 4294901760
        %v836 = vsub.f32 %v377, %v835
        %837 = vmatmul.f32.gmra.mxu0 %v836
        %v838 = vpop.f32.mrf.mxu0
        %v839 = vadd.f32 %v711, %v838
        %v840 = vand.u32 %v378, 4294901760
        %v841 = vsub.f32 %v378, %v840
        %842 = vmatmul.f32.gmra.mxu0 %v841
        %v843 = vpop.f32.mrf.mxu0
        %v844 = vadd.f32 %v715, %v843
        %845 = vdwg.mxu0
        %v846 = vand.u32 %v394, 4294901760
        %847 = vmatpush.msra.mxu0 %v846
        %v848 = vand.u32 %v393, 4294901760
        %849 = vmatpush.msra.mxu0 %v848
        %v850 = vand.u32 %v392, 4294901760
        %851 = vmatpush.msra.mxu0 %v850
        %v852 = vand.u32 %v391, 4294901760
        %853 = vmatpush.msra.mxu0 %v852
        %v854 = vand.u32 %v390, 4294901760
        %855 = vmatpush.msra.mxu0 %v854
        %v856 = vand.u32 %v389, 4294901760
        %857 = vmatpush.msra.mxu0 %v856
        %v858 = vand.u32 %v388, 4294901760
        %859 = vmatpush.msra.mxu0 %v858
        %v860 = vand.u32 %v387, 4294901760
        %861 = vmatpush.msra.mxu0 %v860
        %v862 = vand.u32 %v386, 4294901760
        %863 = vmatpush.msra.mxu0 %v862
        %v864 = vand.u32 %v385, 4294901760
        %865 = vmatpush.msra.mxu0 %v864
        %v866 = vand.u32 %v384, 4294901760
        %867 = vmatpush.msra.mxu0 %v866
        %v868 = vand.u32 %v383, 4294901760
        %869 = vmatpush.msra.mxu0 %v868
        %v870 = vand.u32 %v382, 4294901760
        %871 = vmatpush.msra.mxu0 %v870
        %v872 = vand.u32 %v381, 4294901760
        %873 = vmatpush.msra.mxu0 %v872
        %v874 = vand.u32 %v380, 4294901760
        %875 = vmatpush.msra.mxu0 %v874
        %v876 = vand.u32 %v379, 4294901760
        %877 = vmatpush.msra.mxu0 %v876
        %v878 = vand.u32 %v363, 4294901760
        %v879 = vsub.f32 %v363, %v878
        %v880 = vand.u32 %v879, 4294901760
        %881 = vmatmul.f32.gmra.mxu0 %v880
        %v882 = vpop.f32.mrf.mxu0
        %v883 = vadd.f32 %v769, %v882
        %v884 = vand.u32 %v364, 4294901760
        %v885 = vsub.f32 %v364, %v884
        %v886 = vand.u32 %v885, 4294901760
        %887 = vmatmul.f32.gmra.mxu0 %v886
        %v888 = vpop.f32.mrf.mxu0
        %v889 = vadd.f32 %v774, %v888
        %v890 = vand.u32 %v365, 4294901760
        %v891 = vsub.f32 %v365, %v890
        %v892 = vand.u32 %v891, 4294901760
        %893 = vmatmul.f32.gmra.mxu0 %v892
        %v894 = vpop.f32.mrf.mxu0
        %v895 = vadd.f32 %v779, %v894
        %v896 = vand.u32 %v366, 4294901760
        %v897 = vsub.f32 %v366, %v896
        %v898 = vand.u32 %v897, 4294901760
        %899 = vmatmul.f32.gmra.mxu0 %v898
        %v900 = vpop.f32.mrf.mxu0
        %v901 = vadd.f32 %v784, %v900
        %v902 = vand.u32 %v367, 4294901760
        %v903 = vsub.f32 %v367, %v902
        %v904 = vand.u32 %v903, 4294901760
        %905 = vmatmul.f32.gmra.mxu0 %v904
        %v906 = vpop.f32.mrf.mxu0
        %v907 = vadd.f32 %v789, %v906
        %v908 = vand.u32 %v368, 4294901760
        %v909 = vsub.f32 %v368, %v908
        %v910 = vand.u32 %v909, 4294901760
        %911 = vmatmul.f32.gmra.mxu0 %v910
        %v912 = vpop.f32.mrf.mxu0
        %v913 = vadd.f32 %v794, %v912
        %v914 = vand.u32 %v369, 4294901760
        %v915 = vsub.f32 %v369, %v914
        %v916 = vand.u32 %v915, 4294901760
        %917 = vmatmul.f32.gmra.mxu0 %v916
        %v918 = vpop.f32.mrf.mxu0
        %v919 = vadd.f32 %v799, %v918
        %v920 = vand.u32 %v370, 4294901760
        %v921 = vsub.f32 %v370, %v920
        %v922 = vand.u32 %v921, 4294901760
        %923 = vmatmul.f32.gmra.mxu0 %v922
        %v924 = vpop.f32.mrf.mxu0
        %v925 = vadd.f32 %v804, %v924
        %v926 = vand.u32 %v371, 4294901760
        %v927 = vsub.f32 %v371, %v926
        %v928 = vand.u32 %v927, 4294901760
        %929 = vmatmul.f32.gmra.mxu0 %v928
        %v930 = vpop.f32.mrf.mxu0
        %v931 = vadd.f32 %v809, %v930
        %v932 = vand.u32 %v372, 4294901760
        %v933 = vsub.f32 %v372, %v932
        %v934 = vand.u32 %v933, 4294901760
        %935 = vmatmul.f32.gmra.mxu0 %v934
        %v936 = vpop.f32.mrf.mxu0
        %v937 = vadd.f32 %v814, %v936
        %v938 = vand.u32 %v373, 4294901760
        %v939 = vsub.f32 %v373, %v938
        %v940 = vand.u32 %v939, 4294901760
        %941 = vmatmul.f32.gmra.mxu0 %v940
        %v942 = vpop.f32.mrf.mxu0
        %v943 = vadd.f32 %v819, %v942
        %v944 = vand.u32 %v374, 4294901760
        %v945 = vsub.f32 %v374, %v944
        %v946 = vand.u32 %v945, 4294901760
        %947 = vmatmul.f32.gmra.mxu0 %v946
        %v948 = vpop.f32.mrf.mxu0
        %v949 = vadd.f32 %v824, %v948
        %v950 = vand.u32 %v375, 4294901760
        %v951 = vsub.f32 %v375, %v950
        %v952 = vand.u32 %v951, 4294901760
        %953 = vmatmul.f32.gmra.mxu0 %v952
        %v954 = vpop.f32.mrf.mxu0
        %v955 = vadd.f32 %v829, %v954
        %v956 = vand.u32 %v376, 4294901760
        %v957 = vsub.f32 %v376, %v956
        %v958 = vand.u32 %v957, 4294901760
        %959 = vmatmul.f32.gmra.mxu0 %v958
        %v960 = vpop.f32.mrf.mxu0
        %v961 = vadd.f32 %v834, %v960
        %v962 = vand.u32 %v377, 4294901760
        %v963 = vsub.f32 %v377, %v962
        %v964 = vand.u32 %v963, 4294901760
        %965 = vmatmul.f32.gmra.mxu0 %v964
        %v966 = vpop.f32.mrf.mxu0
        %v967 = vadd.f32 %v839, %v966
        %v968 = vand.u32 %v378, 4294901760
        %v969 = vsub.f32 %v378, %v968
        %v970 = vand.u32 %v969, 4294901760
        %971 = vmatmul.f32.gmra.mxu0 %v970
        %v972 = vpop.f32.mrf.mxu0
        %v973 = vadd.f32 %v844, %v972
        %974 = vdwg.mxu0
        %v975 = vand.u32 %v394, 4294901760
        %v976 = vsub.f32 %v394, %v975
        %v977 = vand.u32 %v976, 4294901760
        %978 = vmatpush.msra.mxu0 %v977
        %v979 = vand.u32 %v393, 4294901760
        %v980 = vsub.f32 %v393, %v979
        %v981 = vand.u32 %v980, 4294901760
        %982 = vmatpush.msra.mxu0 %v981
        %v983 = vand.u32 %v392, 4294901760
        %v984 = vsub.f32 %v392, %v983
        %v985 = vand.u32 %v984, 4294901760
        %986 = vmatpush.msra.mxu0 %v985
        %v987 = vand.u32 %v391, 4294901760
        %v988 = vsub.f32 %v391, %v987
        %v989 = vand.u32 %v988, 4294901760
        %990 = vmatpush.msra.mxu0 %v989
        %v991 = vand.u32 %v390, 4294901760
        %v992 = vsub.f32 %v390, %v991
        %v993 = vand.u32 %v992, 4294901760
        %994 = vmatpush.msra.mxu0 %v993
        %v995 = vand.u32 %v389, 4294901760
        %v996 = vsub.f32 %v389, %v995
        %v997 = vand.u32 %v996, 4294901760
        %998 = vmatpush.msra.mxu0 %v997
        %v999 = vand.u32 %v388, 4294901760
        %v1000 = vsub.f32 %v388, %v999
        %v1001 = vand.u32 %v1000, 4294901760
        %1002 = vmatpush.msra.mxu0 %v1001
        %v1003 = vand.u32 %v387, 4294901760
        %v1004 = vsub.f32 %v387, %v1003
        %v1005 = vand.u32 %v1004, 4294901760
        %1006 = vmatpush.msra.mxu0 %v1005
        %v1007 = vand.u32 %v386, 4294901760
        %v1008 = vsub.f32 %v386, %v1007
        %v1009 = vand.u32 %v1008, 4294901760
        %1010 = vmatpush.msra.mxu0 %v1009
        %v1011 = vand.u32 %v385, 4294901760
        %v1012 = vsub.f32 %v385, %v1011
        %v1013 = vand.u32 %v1012, 4294901760
        %1014 = vmatpush.msra.mxu0 %v1013
        %v1015 = vand.u32 %v384, 4294901760
        %v1016 = vsub.f32 %v384, %v1015
        %v1017 = vand.u32 %v1016, 4294901760
        %1018 = vmatpush.msra.mxu0 %v1017
        %v1019 = vand.u32 %v383, 4294901760
        %v1020 = vsub.f32 %v383, %v1019
        %v1021 = vand.u32 %v1020, 4294901760
        %1022 = vmatpush.msra.mxu0 %v1021
        %v1023 = vand.u32 %v382, 4294901760
        %v1024 = vsub.f32 %v382, %v1023
        %v1025 = vand.u32 %v1024, 4294901760
        %1026 = vmatpush.msra.mxu0 %v1025
        %v1027 = vand.u32 %v381, 4294901760
        %v1028 = vsub.f32 %v381, %v1027
        %v1029 = vand.u32 %v1028, 4294901760
        %1030 = vmatpush.msra.mxu0 %v1029
        %v1031 = vand.u32 %v380, 4294901760
        %v1032 = vsub.f32 %v380, %v1031
        %v1033 = vand.u32 %v1032, 4294901760
        %1034 = vmatpush.msra.mxu0 %v1033
        %v1035 = vand.u32 %v379, 4294901760
        %v1036 = vsub.f32 %v379, %v1035
        %v1037 = vand.u32 %v1036, 4294901760
        %1038 = vmatpush.msra.mxu0 %v1037
        %v1039 = vand.u32 %v363, 4294901760
        %1040 = vmatmul.f32.gmra.mxu0 %v1039
        %v1041 = vpop.f32.mrf.mxu0
        %v1042 = vadd.f32 %v883, %v1041
        %v1043 = vand.u32 %v364, 4294901760
        %1044 = vmatmul.f32.gmra.mxu0 %v1043
        %v1045 = vpop.f32.mrf.mxu0
        %v1046 = vadd.f32 %v889, %v1045
        %v1047 = vand.u32 %v365, 4294901760
        %1048 = vmatmul.f32.gmra.mxu0 %v1047
        %v1049 = vpop.f32.mrf.mxu0
        %v1050 = vadd.f32 %v895, %v1049
        %v1051 = vand.u32 %v366, 4294901760
        %1052 = vmatmul.f32.gmra.mxu0 %v1051
        %v1053 = vpop.f32.mrf.mxu0
        %v1054 = vadd.f32 %v901, %v1053
        %v1055 = vand.u32 %v367, 4294901760
        %1056 = vmatmul.f32.gmra.mxu0 %v1055
        %v1057 = vpop.f32.mrf.mxu0
        %v1058 = vadd.f32 %v907, %v1057
        %v1059 = vand.u32 %v368, 4294901760
        %1060 = vmatmul.f32.gmra.mxu0 %v1059
        %v1061 = vpop.f32.mrf.mxu0
        %v1062 = vadd.f32 %v913, %v1061
        %v1063 = vand.u32 %v369, 4294901760
        %1064 = vmatmul.f32.gmra.mxu0 %v1063
        %v1065 = vpop.f32.mrf.mxu0
        %v1066 = vadd.f32 %v919, %v1065
        %v1067 = vand.u32 %v370, 4294901760
        %1068 = vmatmul.f32.gmra.mxu0 %v1067
        %v1069 = vpop.f32.mrf.mxu0
        %v1070 = vadd.f32 %v925, %v1069
        %v1071 = vand.u32 %v371, 4294901760
        %1072 = vmatmul.f32.gmra.mxu0 %v1071
        %v1073 = vpop.f32.mrf.mxu0
        %v1074 = vadd.f32 %v931, %v1073
        %v1075 = vand.u32 %v372, 4294901760
        %1076 = vmatmul.f32.gmra.mxu0 %v1075
        %v1077 = vpop.f32.mrf.mxu0
        %v1078 = vadd.f32 %v937, %v1077
        %v1079 = vand.u32 %v373, 4294901760
        %1080 = vmatmul.f32.gmra.mxu0 %v1079
        %v1081 = vpop.f32.mrf.mxu0
        %v1082 = vadd.f32 %v943, %v1081
        %v1083 = vand.u32 %v374, 4294901760
        %1084 = vmatmul.f32.gmra.mxu0 %v1083
        %v1085 = vpop.f32.mrf.mxu0
        %v1086 = vadd.f32 %v949, %v1085
        %v1087 = vand.u32 %v375, 4294901760
        %1088 = vmatmul.f32.gmra.mxu0 %v1087
        %v1089 = vpop.f32.mrf.mxu0
        %v1090 = vadd.f32 %v955, %v1089
        %v1091 = vand.u32 %v376, 4294901760
        %1092 = vmatmul.f32.gmra.mxu0 %v1091
        %v1093 = vpop.f32.mrf.mxu0
        %v1094 = vadd.f32 %v961, %v1093
        %v1095 = vand.u32 %v377, 4294901760
        %1096 = vmatmul.f32.gmra.mxu0 %v1095
        %v1097 = vpop.f32.mrf.mxu0
        %v1098 = vadd.f32 %v967, %v1097
        %v1099 = vand.u32 %v378, 4294901760
        %1100 = vmatmul.f32.gmra.mxu0 %v1099
        %v1101 = vpop.f32.mrf.mxu0
        %v1102 = vadd.f32 %v973, %v1101
        %1103 = vdwg.mxu0
        %v1104 = vand.u32 %v394, 4294901760
        %1105 = vmatpush.msra.mxu0 %v1104
        %v1106 = vand.u32 %v393, 4294901760
        %1107 = vmatpush.msra.mxu0 %v1106
        %v1108 = vand.u32 %v392, 4294901760
        %1109 = vmatpush.msra.mxu0 %v1108
        %v1110 = vand.u32 %v391, 4294901760
        %1111 = vmatpush.msra.mxu0 %v1110
        %v1112 = vand.u32 %v390, 4294901760
        %1113 = vmatpush.msra.mxu0 %v1112
        %v1114 = vand.u32 %v389, 4294901760
        %1115 = vmatpush.msra.mxu0 %v1114
        %v1116 = vand.u32 %v388, 4294901760
        %1117 = vmatpush.msra.mxu0 %v1116
        %v1118 = vand.u32 %v387, 4294901760
        %1119 = vmatpush.msra.mxu0 %v1118
        %v1120 = vand.u32 %v386, 4294901760
        %1121 = vmatpush.msra.mxu0 %v1120
        %v1122 = vand.u32 %v385, 4294901760
        %1123 = vmatpush.msra.mxu0 %v1122
        %v1124 = vand.u32 %v384, 4294901760
        %1125 = vmatpush.msra.mxu0 %v1124
        %v1126 = vand.u32 %v383, 4294901760
        %1127 = vmatpush.msra.mxu0 %v1126
        %v1128 = vand.u32 %v382, 4294901760
        %1129 = vmatpush.msra.mxu0 %v1128
        %v1130 = vand.u32 %v381, 4294901760
        %1131 = vmatpush.msra.mxu0 %v1130
        %v1132 = vand.u32 %v380, 4294901760
        %1133 = vmatpush.msra.mxu0 %v1132
        %v1134 = vand.u32 %v379, 4294901760
        %1135 = vmatpush.msra.mxu0 %v1134
        %v1136 = vand.u32 %v363, 4294901760
        %1137 = vmatmul.f32.gmra.mxu0 %v1136
        %v1138 = vpop.f32.mrf.mxu0
        %v1139 = vadd.f32 %v1042, %v1138
        %v1140 = vand.u32 %v364, 4294901760
        %1141 = vmatmul.f32.gmra.mxu0 %v1140
        %v1142 = vpop.f32.mrf.mxu0
        %v1143 = vadd.f32 %v1046, %v1142
        %v1144 = vand.u32 %v365, 4294901760
        %1145 = vmatmul.f32.gmra.mxu0 %v1144
        %v1146 = vpop.f32.mrf.mxu0
        %v1147 = vadd.f32 %v1050, %v1146
        %v1148 = vand.u32 %v366, 4294901760
        %1149 = vmatmul.f32.gmra.mxu0 %v1148
        %v1150 = vpop.f32.mrf.mxu0
        %v1151 = vadd.f32 %v1054, %v1150
        %v1152 = vand.u32 %v367, 4294901760
        %1153 = vmatmul.f32.gmra.mxu0 %v1152
        %v1154 = vpop.f32.mrf.mxu0
        %v1155 = vadd.f32 %v1058, %v1154
        %v1156 = vand.u32 %v368, 4294901760
        %1157 = vmatmul.f32.gmra.mxu0 %v1156
        %v1158 = vpop.f32.mrf.mxu0
        %v1159 = vadd.f32 %v1062, %v1158
        %v1160 = vand.u32 %v369, 4294901760
        %1161 = vmatmul.f32.gmra.mxu0 %v1160
        %v1162 = vpop.f32.mrf.mxu0
        %v1163 = vadd.f32 %v1066, %v1162
        %v1164 = vand.u32 %v370, 4294901760
        %1165 = vmatmul.f32.gmra.mxu0 %v1164
        %v1166 = vpop.f32.mrf.mxu0
        %v1167 = vadd.f32 %v1070, %v1166
        %v1168 = vand.u32 %v371, 4294901760
        %1169 = vmatmul.f32.gmra.mxu0 %v1168
        %v1170 = vpop.f32.mrf.mxu0
        %v1171 = vadd.f32 %v1074, %v1170
        %v1172 = vand.u32 %v372, 4294901760
        %1173 = vmatmul.f32.gmra.mxu0 %v1172
        %v1174 = vpop.f32.mrf.mxu0
        %v1175 = vadd.f32 %v1078, %v1174
        %v1176 = vand.u32 %v373, 4294901760
        %1177 = vmatmul.f32.gmra.mxu0 %v1176
        %v1178 = vpop.f32.mrf.mxu0
        %v1179 = vadd.f32 %v1082, %v1178
        %v1180 = vand.u32 %v374, 4294901760
        %1181 = vmatmul.f32.gmra.mxu0 %v1180
        %v1182 = vpop.f32.mrf.mxu0
        %v1183 = vadd.f32 %v1086, %v1182
        %v1184 = vand.u32 %v375, 4294901760
        %1185 = vmatmul.f32.gmra.mxu0 %v1184
        %v1186 = vpop.f32.mrf.mxu0
        %v1187 = vadd.f32 %v1090, %v1186
        %v1188 = vand.u32 %v376, 4294901760
        %1189 = vmatmul.f32.gmra.mxu0 %v1188
        %v1190 = vpop.f32.mrf.mxu0
        %v1191 = vadd.f32 %v1094, %v1190
        %v1192 = vand.u32 %v377, 4294901760
        %1193 = vmatmul.f32.gmra.mxu0 %v1192
        %v1194 = vpop.f32.mrf.mxu0
        %v1195 = vadd.f32 %v1098, %v1194
        %v1196 = vand.u32 %v378, 4294901760
        %1197 = vmatmul.f32.gmra.mxu0 %v1196
        %v1198 = vpop.f32.mrf.mxu0
        %v1199 = vadd.f32 %v1102, %v1198
        %1200 = vdwg.mxu0
        %v1201 = vadd.f32 %v347, %v1139
        %v1202 = vadd.f32 %v348, %v1143
        %v1203 = vadd.f32 %v349, %v1147
        %v1204 = vadd.f32 %v350, %v1151
        %v1205 = vadd.f32 %v351, %v1155
        %v1206 = vadd.f32 %v352, %v1159
        %v1207 = vadd.f32 %v353, %v1163
        %v1208 = vadd.f32 %v354, %v1167
        %v1209 = vadd.f32 %v355, %v1171
        %v1210 = vadd.f32 %v356, %v1175
        %v1211 = vadd.f32 %v357, %v1179
        %v1212 = vadd.f32 %v358, %v1183
        %v1213 = vadd.f32 %v359, %v1187
        %v1214 = vadd.f32 %v360, %v1191
        %v1215 = vadd.f32 %v361, %v1195
        %v1216 = vadd.f32 %v362, %v1199
        %1217 = vst [vmem:[#allocation2] sm:$0xff] %v1201
        %1218 = vst [vmem:[#allocation2 + $0x8] sm:$0xff] %v1202
        %1219 = vst [vmem:[#allocation2 + $0x10] sm:$0xff] %v1203
        %1220 = vst [vmem:[#allocation2 + $0x18] sm:$0xff] %v1204
        %1221 = vst [vmem:[#allocation2 + $0x20] sm:$0xff] %v1205
        %1222 = vst [vmem:[#allocation2 + $0x28] sm:$0xff] %v1206
        %1223 = vst [vmem:[#allocation2 + $0x30] sm:$0xff] %v1207
        %1224 = vst [vmem:[#allocation2 + $0x38] sm:$0xff] %v1208
        %1225 = vst [vmem:[#allocation2 + $0x40] sm:$0xff] %v1209
        %1226 = vst [vmem:[#allocation2 + $0x48] sm:$0xff] %v1210
        %1227 = vst [vmem:[#allocation2 + $0x50] sm:$0xff] %v1211
        %1228 = vst [vmem:[#allocation2 + $0x58] sm:$0xff] %v1212
        %1229 = vst [vmem:[#allocation2 + $0x60] sm:$0xff] %v1213
        %1230 = vst [vmem:[#allocation2 + $0x68] sm:$0xff] %v1214
        %1231 = vst [vmem:[#allocation2 + $0x70] sm:$0xff] %v1215
        %1232 = vst [vmem:[#allocation2 + $0x78] sm:$0xff] %v1216
        // Predicated region
        $region49: #{tpu_custom_call.1} parent=31 // pred_check
          %p1233 = pneg %p327
        $region50: #{tpu_custom_call.1} parent=31 // pred_check_branch
          %1235 = sbr.rel (%p1233) target = $region52
        $region51: #{tpu_custom_call.1} parent=31 // pred_region
          %v1236 = vld [vmem:[#allocation2] sm:$0xff]
          %v1237 = vld [vmem:[#allocation2 + $0x8] sm:$0xff]
          %v1238 = vld [vmem:[#allocation2 + $0x10] sm:$0xff]
          %v1239 = vld [vmem:[#allocation2 + $0x18] sm:$0xff]
          %v1240 = vld [vmem:[#allocation2 + $0x20] sm:$0xff]
          %v1241 = vld [vmem:[#allocation2 + $0x28] sm:$0xff]
          %v1242 = vld [vmem:[#allocation2 + $0x30] sm:$0xff]
          %v1243 = vld [vmem:[#allocation2 + $0x38] sm:$0xff]
          %v1244 = vld [vmem:[#allocation2 + $0x40] sm:$0xff]
          %v1245 = vld [vmem:[#allocation2 + $0x48] sm:$0xff]
          %v1246 = vld [vmem:[#allocation2 + $0x50] sm:$0xff]
          %v1247 = vld [vmem:[#allocation2 + $0x58] sm:$0xff]
          %v1248 = vld [vmem:[#allocation2 + $0x60] sm:$0xff]
          %v1249 = vld [vmem:[#allocation2 + $0x68] sm:$0xff]
          %v1250 = vld [vmem:[#allocation2 + $0x70] sm:$0xff]
          %v1251 = vld [vmem:[#allocation2 + $0x78] sm:$0xff]
          %v1252 = vld [vmem:[%s289] sm:$0xff]
          %v1253 = vld [vmem:[%s289 + $0x8] sm:$0xff]
          %v1254 = vld [vmem:[%s289 + $0x10] sm:$0xff]
          %v1255 = vld [vmem:[%s289 + $0x18] sm:$0xff]
          %v1256 = vld [vmem:[%s289 + $0x20] sm:$0xff]
          %v1257 = vld [vmem:[%s289 + $0x28] sm:$0xff]
          %v1258 = vld [vmem:[%s289 + $0x30] sm:$0xff]
          %v1259 = vld [vmem:[%s289 + $0x38] sm:$0xff]
          %v1260 = vld [vmem:[%s289 + $0x40] sm:$0xff]
          %v1261 = vld [vmem:[%s289 + $0x48] sm:$0xff]
          %v1262 = vld [vmem:[%s289 + $0x50] sm:$0xff]
          %v1263 = vld [vmem:[%s289 + $0x58] sm:$0xff]
          %v1264 = vld [vmem:[%s289 + $0x60] sm:$0xff]
          %v1265 = vld [vmem:[%s289 + $0x68] sm:$0xff]
          %v1266 = vld [vmem:[%s289 + $0x70] sm:$0xff]
          %v1267 = vld [vmem:[%s289 + $0x78] sm:$0xff]
          %v1268 = vadd.s32 %v1252, 2147483648
          %vm1270 = vcmp.ge.s32.totalorder %v1268, 2576980378
          %v1271 = vadd.s32 %v1253, 2147483648
          %vm1273 = vcmp.ge.s32.totalorder %v1271, 2576980378
          %v1274 = vadd.s32 %v1254, 2147483648
          %vm1276 = vcmp.ge.s32.totalorder %v1274, 2576980378
          %v1277 = vadd.s32 %v1255, 2147483648
          %vm1279 = vcmp.ge.s32.totalorder %v1277, 2576980378
          %v1280 = vadd.s32 %v1256, 2147483648
          %vm1282 = vcmp.ge.s32.totalorder %v1280, 2576980378
          %v1283 = vadd.s32 %v1257, 2147483648
          %vm1285 = vcmp.ge.s32.totalorder %v1283, 2576980378
          %v1286 = vadd.s32 %v1258, 2147483648
          %vm1288 = vcmp.ge.s32.totalorder %v1286, 2576980378
          %v1289 = vadd.s32 %v1259, 2147483648
          %vm1291 = vcmp.ge.s32.totalorder %v1289, 2576980378
          %v1292 = vadd.s32 %v1260, 2147483648
          %vm1294 = vcmp.ge.s32.totalorder %v1292, 2576980378
          %v1295 = vadd.s32 %v1261, 2147483648
          %vm1297 = vcmp.ge.s32.totalorder %v1295, 2576980378
          %v1298 = vadd.s32 %v1262, 2147483648
          %vm1300 = vcmp.ge.s32.totalorder %v1298, 2576980378
          %v1301 = vadd.s32 %v1263, 2147483648
          %vm1303 = vcmp.ge.s32.totalorder %v1301, 2576980378
          %v1304 = vadd.s32 %v1264, 2147483648
          %vm1306 = vcmp.ge.s32.totalorder %v1304, 2576980378
          %v1307 = vadd.s32 %v1265, 2147483648
          %vm1309 = vcmp.ge.s32.totalorder %v1307, 2576980378
          %v1310 = vadd.s32 %v1266, 2147483648
          %vm1312 = vcmp.ge.s32.totalorder %v1310, 2576980378
          %v1313 = vadd.s32 %v1267, 2147483648
          %vm1315 = vcmp.ge.s32.totalorder %v1313, 2576980378
          %v1316 = vmul.f32 %v1236, %v1236
          %v1317 = vmul.f32 %v1237, %v1237
          %v1318 = vmul.f32 %v1238, %v1238
          %v1319 = vmul.f32 %v1239, %v1239
          %v1320 = vmul.f32 %v1240, %v1240
          %v1321 = vmul.f32 %v1241, %v1241
          %v1322 = vmul.f32 %v1242, %v1242
          %v1323 = vmul.f32 %v1243, %v1243
          %v1324 = vmul.f32 %v1244, %v1244
          %v1325 = vmul.f32 %v1245, %v1245
          %v1326 = vmul.f32 %v1246, %v1246
          %v1327 = vmul.f32 %v1247, %v1247
          %v1328 = vmul.f32 %v1248, %v1248
          %v1329 = vmul.f32 %v1249, %v1249
          %v1330 = vmul.f32 %v1250, %v1250
          %v1331 = vmul.f32 %v1251, %v1251
          %v1332 = vmul.f32 %v1316, 1.1111112
          %v1333 = vmul.f32 %v1317, 1.1111112
          %v1334 = vmul.f32 %v1318, 1.1111112
          %v1335 = vmul.f32 %v1319, 1.1111112
          %v1336 = vmul.f32 %v1320, 1.1111112
          %v1337 = vmul.f32 %v1321, 1.1111112
          %v1338 = vmul.f32 %v1322, 1.1111112
          %v1339 = vmul.f32 %v1323, 1.1111112
          %v1340 = vmul.f32 %v1324, 1.1111112
          %v1341 = vmul.f32 %v1325, 1.1111112
          %v1342 = vmul.f32 %v1326, 1.1111112
          %v1343 = vmul.f32 %v1327, 1.1111112
          %v1344 = vmul.f32 %v1328, 1.1111112
          %v1345 = vmul.f32 %v1329, 1.1111112
          %v1346 = vmul.f32 %v1330, 1.1111112
          %v1347 = vmul.f32 %v1331, 1.1111112
          %v1348 = vsel %vm1270, %v1332, 0.0
          %v1349 = vsel %vm1273, %v1333, 0.0
          %v1350 = vsel %vm1276, %v1334, 0.0
          %v1351 = vsel %vm1279, %v1335, 0.0
          %v1352 = vsel %vm1282, %v1336, 0.0
          %v1353 = vsel %vm1285, %v1337, 0.0
          %v1354 = vsel %vm1288, %v1338, 0.0
          %v1355 = vsel %vm1291, %v1339, 0.0
          %v1356 = vsel %vm1294, %v1340, 0.0
          %v1357 = vsel %vm1297, %v1341, 0.0
          %v1358 = vsel %vm1300, %v1342, 0.0
          %v1359 = vsel %vm1303, %v1343, 0.0
          %v1360 = vsel %vm1306, %v1344, 0.0
          %v1361 = vsel %vm1309, %v1345, 0.0
          %v1362 = vsel %vm1312, %v1346, 0.0
          %v1363 = vsel %vm1315, %v1347, 0.0
          %1364 = vst [vmem:[%s322] sm:$0xff] %v1348
          %1365 = vst [vmem:[%s322 + $0x8] sm:$0xff] %v1349
          %1366 = vst [vmem:[%s322 + $0x10] sm:$0xff] %v1350
          %1367 = vst [vmem:[%s322 + $0x18] sm:$0xff] %v1351
          %1368 = vst [vmem:[%s322 + $0x20] sm:$0xff] %v1352
          %1369 = vst [vmem:[%s322 + $0x28] sm:$0xff] %v1353
          %1370 = vst [vmem:[%s322 + $0x30] sm:$0xff] %v1354
          %1371 = vst [vmem:[%s322 + $0x38] sm:$0xff] %v1355
          %1372 = vst [vmem:[%s322 + $0x40] sm:$0xff] %v1356
          %1373 = vst [vmem:[%s322 + $0x48] sm:$0xff] %v1357
          %1374 = vst [vmem:[%s322 + $0x50] sm:$0xff] %v1358
          %1375 = vst [vmem:[%s322 + $0x58] sm:$0xff] %v1359
          %1376 = vst [vmem:[%s322 + $0x60] sm:$0xff] %v1360
          %1377 = vst [vmem:[%s322 + $0x68] sm:$0xff] %v1361
          %1378 = vst [vmem:[%s322 + $0x70] sm:$0xff] %v1362
          %1379 = vst [vmem:[%s322 + $0x78] sm:$0xff] %v1363
        $region52: #{tpu_custom_call.1} parent=31 // pred_fallthru
          _
        %s1380 = sand.u32 %s151, 1
        %s1381 = scalar_lea.sflag [#allocation5], %s1380
        %s1382 = sand.u32 %s151, 1
        %s1383 = smul.addr %s1382, 128
        %s1384 = scalar_lea.vmem [#allocation9], %s1383
        // Predicated region
        $region53: #{tpu_custom_call.1} parent=31 // pred_check
          %p1385 = pneg %p161
        $region54: #{tpu_custom_call.1} parent=31 // pred_check_branch
          %1387 = sbr.rel (%p1385) target = $region56
        $region55: #{tpu_custom_call.1} parent=31 // pred_region
          %s1388 = smul.u32 16, %s30
          %1390 = vsyncadd %s1381, 0
          %s1391 = sadd.s32 %s31, %s1388
          %s1392 = smul.addr %s29, 16
          %s1393 = sadd.s32 %s1391, %s1392
          %s1394 = smul.addr %s1393, 8
          %s1395 = scalar_lea.hbm %s3, %s1394
          %s1396 = sshll.u32 %s1384, 4
          %s1397 = int_to_ptr.vmem [resolvable:$true] %s1396
          %s1398 = sshll.u32 %s1395, 4
          %s1399 = int_to_ptr.hbm [resolvable:$true] %s1398
          %1404 = dma.vmem_to_hbm [thread:$0]  %s1397, 2048, %s1399, %s1381, 128, 128, 8
        $region56: #{tpu_custom_call.1} parent=31 // pred_fallthru
          _
      $region32: #{tpu_custom_call.1} parent=5 // pred_fallthru
        _
      %p1405 = scmp.le.s32.totalorder 2, %s18
      // Predicated region
      $region57: #{tpu_custom_call.1} parent=5 // pred_check
        %p1406 = pneg %p1405
      $region58: #{tpu_custom_call.1} parent=5 // pred_check_branch
        %1408 = sbr.rel (%p1406) target = $region60
      $region59: #{tpu_custom_call.1} parent=5 // pred_region
        %s1409 = ssub.s32 %s18, 2
        // Predicated region
        $region61: #{tpu_custom_call.1} parent=59 // pred_check
          %p1410 = pneg %p167
        $region62: #{tpu_custom_call.1} parent=59 // pred_check_branch
          %1412 = sbr.rel (%p1410) target = $region64
        $region63: #{tpu_custom_call.1} parent=59 // pred_region
          %s1413 = sand.u32 %s152, 1
          %s1414 = scalar_lea.sflag [#allocation5], %s1413
          %s1415 = sand.u32 %s152, 1
          %s1416 = smul.addr %s1415, 128
          %s1417 = scalar_lea.vmem [#allocation9], %s1416
          %1419 = dma.done %s1414, 2048
        $region64: #{tpu_custom_call.1} parent=59 // pred_fallthru
          _
      $region60: #{tpu_custom_call.1} parent=5 // pred_fallthru
        _
    $region6: #{tpu_custom_call.1} parent=1 // loop_footer
      %s22 = sadd.s32 1, %s18
    $region7: #{tpu_custom_call.1} parent=1 // loop_footer_branch
      %17 = sbr.rel target = $region3
    $region8: #{tpu_custom_call.1} parent=1 // loop_exit
      _
    %1420 = vsyncpa [#allocation4], 1
    %s1421 = scalar_lea.sflag [#allocation4], 1
    %1422 = vsyncpa %s1421, 1
    %1423 = vsyncpa [#allocation7], 1
    %s1424 = scalar_lea.sflag [#allocation7], 1
    %1425 = vsyncpa %s1424, 1
    %1426 = vsyncpa [#allocation5], 1
    %s1427 = scalar_lea.sflag [#allocation5], 1
    %1428 = vsyncpa %s1427, 1

</llo_original>
